<compile_context>
chip_gen: v5e
topology: v5e:2x2
jax: 0.10.0
libtpu: 0.0.40
codegen_flags: <defaults>
</compile_context>

<pallas_src>
import jax
import jax.numpy as jnp
from jax.experimental import pallas as pl
from jax.experimental.pallas import tpu as pltpu


def _attgru_kernel(instr_ref, emb_ref, mem_ref, w_ref, b_ref, o_ref):
    # instr_ref: (TB, L)    int32     token ids (0 == padding)
    # emb_ref:   (TB, L, D) bf16/f32  per-token instruction embeddings
    # mem_ref:   (TB, Ms)   f32       memory (Ms = 2 * memory_dim)
    # w_ref:     (Ms, D)    f32       memory2key weight, stored (in, out) == torch W.T
    # b_ref:     (1, D)     f32       memory2key bias
    # o_ref:     (TB, D)    f32       attended instruction embedding
    emb = emb_ref[...].astype(jnp.float32)          # upcast once (v5e VPU has no bf16)

    keys = (
        jnp.dot(
            mem_ref[...],
            w_ref[...],
            preferred_element_type=jnp.float32,
            precision=jax.lax.Precision.HIGHEST,    # f32 parity with the torch f32 Linear
        )
        + b_ref[...]
    )                                               # (TB, D)

    mask = (instr_ref[...] != 0).astype(jnp.float32)                 # (TB, L)
    # scores over the token axis, +1000 on real tokens (as in the module)
    pre = jnp.sum(keys[:, None, :] * emb, axis=-1) + 1000.0 * mask   # (TB, L)

    # numerically stable softmax over tokens (matches F.softmax(dim=1))
    pre = pre - jnp.max(pre, axis=-1, keepdims=True)
    e = jnp.exp(pre)
    inv = pl.reciprocal(jnp.sum(e, axis=-1, keepdims=True), approx=False)
    attn = e * inv                                                   # (TB, L)

    o_ref[...] = jnp.sum(emb * attn[:, :, None], axis=1).astype(o_ref.dtype)


def _pick_tile_and_vmem(B, L, D, Ms, emb_itemsize):
    """Generation-aware batch tile + explicit scoped-VMEM limit."""
    try:
        vmem_phys = int(pltpu.get_tpu_info().vmem_capacity_bytes)  # 128 MiB v5e/v6e, 64 MiB v7x
    except Exception:
        vmem_phys = 64 << 20                                       # conservative (v7x)
    budget = max(16 << 20, vmem_phys // 2 - (8 << 20))
    # per-batch-row VMEM bytes: double-buffered emb input + f32 working copies of
    # the (L, D) intermediates, plus the small mem / instr / out / score tensors.
    row = L * D * (2 * emb_itemsize + 3 * 4) + 2 * (Ms + 2 * D) * 4 + 8 * L * 4
    tb = min(B, 4096, max(1, budget // row))
    if tb < B:
        tb = max(8, (tb // 8) * 8)                 # sublane-aligned batch tiles
    weights = 2 * (Ms * D * 4 + D * 4)
    vmem_limit = int(min(vmem_phys - (4 << 20),
                         max(16 << 20, tb * row + weights + (8 << 20))))
    return tb, vmem_limit


def memory_language_attention_pallas(instr, instr_embedding, memory, params,
                                     lang_model="attgru",
                                     emb_dtype=jnp.bfloat16,
                                     tile_b=None):
    """Forward pass of MemoryLanguageAttention.

    instr:            (B, L_instr) int token ids (0 == padding)
    instr_embedding:  (B, L_emb, instr_dim) float
    memory:           (B, 2 * memory_dim) float
    params:           {'w': (memory_size, instr_dim), 'b': (instr_dim,)}
    returns           (B, instr_dim) float32 (attgru) or instr_embedding (other)
    """
    if lang_model != "attgru":
        return instr_embedding          # non-attgru path is an identity

    B, L_emb, D = instr_embedding.shape
    L = min(instr.shape[1], L_emb)

    # instr is tiny (int32 tokens): slicing it in XLA is free.  The big tensor
    # (instr_embedding) is NOT sliced here; its [:, :L] truncation is expressed
    # through the token block of its BlockSpec below (block index 0, size L),
    # so no extra HBM copy of the largest tensor is made.
    instr = instr[:, :L].astype(jnp.int32)
    sub = 16 if jnp.dtype(emb_dtype).itemsize < 4 else 8
    if L != L_emb and L % sub != 0:
        # Ragged token block would violate (8,128)/packed-sublane tiling;
        # fall back to an XLA slice for this rare shape.
        # TODO(synk): pad the token axis instead to keep the copy-free path.
        instr_embedding = instr_embedding[:, :L, :]
        L_emb = L

    emb = instr_embedding.astype(emb_dtype)   # bf16 halves the dominant HBM traffic
    memory = memory.astype(jnp.float32)
    w = params["w"].astype(jnp.float32)
    b = params["b"].reshape(1, D).astype(jnp.float32)
    Ms = memory.shape[1]

    tb, vmem_limit = _pick_tile_and_vmem(B, L, D, Ms, jnp.dtype(emb_dtype).itemsize)
    if tile_b is not None:
        tb = min(tile_b, B)
    grid = (pl.cdiv(B, tb),)

    return pl.pallas_call(
        _attgru_kernel,
        out_shape=jax.ShapeDtypeStruct((B, D), jnp.float32),
        grid=grid,
        in_specs=[
            pl.BlockSpec((tb, L), lambda i: (i, 0)),         # instr
            pl.BlockSpec((tb, L, D), lambda i: (i, 0, 0)),   # emb: token block 0 == [:, :L]
            pl.BlockSpec((tb, Ms), lambda i: (i, 0)),        # memory
            pl.BlockSpec((Ms, D), lambda i: (0, 0)),         # weight: VMEM-resident across steps
            pl.BlockSpec((1, D), lambda i: (0, 0)),          # bias:   VMEM-resident across steps
        ],
        out_specs=pl.BlockSpec((tb, D), lambda i: (i, 0)),   # lane-dense when D % 128 == 0
        compiler_params=pltpu.CompilerParams(
            dimension_semantics=("parallel",),               # shard batch over v7x's 2 TCs
            vmem_limit_bytes=vmem_limit,
        ),
    )(instr, emb, memory, w, b)


def init_params(key, instr_dim, memory_dim):
    """memory2key = nn.Linear(memory_size, instr_dim), memory_size = 2*memory_dim.
    Stored as (in, out) so the kernel computes memory @ W (== torch memory @ W.T)."""
    memory_size = 2 * memory_dim
    kw, kb = jax.random.split(key)
    lim = 1.0 / jnp.sqrt(jnp.float32(memory_size))
    return {
        "w": jax.random.uniform(kw, (memory_size, instr_dim), jnp.float32, -lim, lim),
        "b": jax.random.uniform(kb, (instr_dim,), jnp.float32, -lim, lim),
    }


def _reference(instr, instr_embedding, memory, params):
    L = min(instr.shape[1], instr_embedding.shape[1])
    mask = (instr[:, :L] != 0).astype(jnp.float32)
    emb = instr_embedding[:, :L].astype(jnp.float32)
    keys = (
        jnp.dot(memory, params["w"], precision=jax.lax.Precision.HIGHEST)
        + params["b"]
    )
    pre = jnp.sum(keys[:, None, :] * emb, axis=2) + 1000.0 * mask
    attn = jax.nn.softmax(pre, axis=1)
    return jnp.sum(emb * attn[:, :, None], axis=1)


if __name__ == "__main__":
    # small shapes consistent with the module (attgru path)
    batch = 8
    seq = 8
    instr_dim = 128          # lane-dense output
    memory_dim = 64          # memory_size = 2 * memory_dim = 128

    key = jax.random.PRNGKey(0)
    kp, kt, ke, km = jax.random.split(key, 4)

    params = init_params(kp, instr_dim, memory_dim)
    # token ids in [0, 10): zeros act as padding and exercise the mask path
    instr = jax.random.randint(kt, (batch, seq), 0, 10, dtype=jnp.int32)
    instr_embedding = jax.random.normal(ke, (batch, seq, instr_dim), jnp.float32)
    memory = jax.random.normal(km, (batch, 2 * memory_dim), jnp.float32)

    # 1) exact f32 path: bit-for-bit semantics of the torch module
    out_f32 = memory_language_attention_pallas(
        instr, instr_embedding, memory, params, emb_dtype=jnp.float32)
    out_f32 = jax.block_until_ready(out_f32)
    ref_f32 = _reference(instr, instr_embedding, memory, params)
    assert out_f32.shape == (batch, instr_dim)
    assert jnp.allclose(out_f32, ref_f32, atol=1e-5, rtol=1e-5)

    # 2) default bf16-embedding path (compare against a reference on the same
    #    bf16-rounded embeddings; all compute is still f32)
    out_bf16 = memory_language_attention_pallas(instr, instr_embedding, memory, params)
    out_bf16 = jax.block_until_ready(out_bf16)
    ref_bf16 = _reference(instr, instr_embedding.astype(jnp.bfloat16), memory, params)
    assert jnp.allclose(out_bf16, ref_bf16, atol=1e-4, rtol=1e-4)

    # 3) multi-step grid path with a partial last block (B=20, TB=8 -> grid=3),
    #    exercising the batch pipeline + resident weights
    b2 = 20
    k2t, k2e, k2m = jax.random.split(jax.random.PRNGKey(1), 3)
    instr2 = jax.random.randint(k2t, (b2, seq), 0, 10, dtype=jnp.int32)
    emb2 = jax.random.normal(k2e, (b2, seq, instr_dim), jnp.float32)
    mem2 = jax.random.normal(k2m, (b2, 2 * memory_dim), jnp.float32)
    out2 = memory_language_attention_pallas(
        instr2, emb2, mem2, params, emb_dtype=jnp.float32, tile_b=8)
    out2 = jax.block_until_ready(out2)
    ref2 = _reference(instr2, emb2, mem2, params)
    assert out2.shape == (b2, instr_dim)
    assert jnp.allclose(out2, ref2, atol=1e-5, rtol=1e-5)

    # 4) non-attgru path is an identity on instr_embedding
    ident = memory_language_attention_pallas(
        instr, instr_embedding, memory, params, lang_model="gru")
    assert ident is instr_embedding

    print("KERNEL_OK")
</pallas_src>

<mosaic_0001>
module attributes {stable_mosaic.version = 11 : i64} {
  func.func @_attgru_kernel(%arg0: i32, %arg1: memref<8x8xi32, #tpu.memory_space<vmem>>, %arg2: memref<8x8x128xf32, #tpu.memory_space<vmem>>, %arg3: memref<8x128xf32, #tpu.memory_space<vmem>>, %arg4: memref<128x128xf32, #tpu.memory_space<vmem>>, %arg5: memref<1x128xf32, #tpu.memory_space<vmem>>, %arg6: memref<8x128xf32, #tpu.memory_space<vmem>>) attributes {dimension_semantics = [#tpu.dimension_semantics<parallel>], iteration_bounds = array<i64: 1>, scalar_prefetch = 0 : i64, scratch_operands = 0 : i64, tpu.core_type = #tpu.core_type<tc>, window_params = [{transform_indices = @transform_0, window_bounds = array<i64: 8, 8>}, {transform_indices = @transform_1, window_bounds = array<i64: 8, 8, 128>}, {transform_indices = @transform_2, window_bounds = array<i64: 8, 128>}, {pipeline_mode = #tpu.pipeline_mode<synchronous>, transform_indices = @transform_3, window_bounds = array<i64: 128, 128>}, {pipeline_mode = #tpu.pipeline_mode<synchronous>, transform_indices = @transform_4, window_bounds = array<i64: 1, 128>}, {transform_indices = @transform_5, window_bounds = array<i64: 8, 128>}]} {
    %c0 = arith.constant 0 : index
    %c0_0 = arith.constant 0 : index
    %c0_1 = arith.constant 0 : index
    %0 = vector.load %arg2[%c0, %c0_0, %c0_1] : memref<8x8x128xf32, #tpu.memory_space<vmem>>, vector<8x8x128xf32>
    %c0_2 = arith.constant 0 : index
    %c0_3 = arith.constant 0 : index
    %1 = vector.load %arg3[%c0_2, %c0_3] : memref<8x128xf32, #tpu.memory_space<vmem>>, vector<8x128xf32>
    %c0_4 = arith.constant 0 : index
    %c0_5 = arith.constant 0 : index
    %2 = vector.load %arg4[%c0_4, %c0_5] : memref<128x128xf32, #tpu.memory_space<vmem>>, vector<128x128xf32>
    %cst = arith.constant dense<0.000000e+00> : vector<8x128xf32>
    %3 = tpu.matmul %1, %2, %cst {dimension_numbers = #tpu.dot_dimension_numbers<[1], [0], [0], [1], [0, 0, 1, 1], [], []>, precision = #tpu.contract_precision<fp32>} : vector<8x128xf32>, vector<128x128xf32>, vector<8x128xf32> -> vector<8x128xf32>
    %c0_6 = arith.constant 0 : index
    %c0_7 = arith.constant 0 : index
    %4 = vector.load %arg5[%c0_6, %c0_7] : memref<1x128xf32, #tpu.memory_space<vmem>>, vector<1x128xf32>
    %5 = vector.broadcast %4 : vector<1x128xf32> to vector<8x128xf32>
    %6 = arith.addf %3, %5 : vector<8x128xf32>
    %c0_8 = arith.constant 0 : index
    %c0_9 = arith.constant 0 : index
    %7 = vector.load %arg1[%c0_8, %c0_9] : memref<8x8xi32, #tpu.memory_space<vmem>>, vector<8x8xi32>
    %c0_i32 = arith.constant 0 : i32
    %8 = vector.broadcast %c0_i32 : i32 to vector<8x8xi32>
    %9 = arith.cmpi ne, %7, %8 : vector<8x8xi32>
    %10 = arith.extui %9 : vector<8x8xi1> to vector<8x8xi32>
    %11 = arith.sitofp %10 : vector<8x8xi32> to vector<8x8xf32>
    %12 = vector.shape_cast %6 : vector<8x128xf32> to vector<8x1x128xf32>
    %13 = vector.broadcast %12 : vector<8x1x128xf32> to vector<8x8x128xf32>
    %14 = arith.mulf %13, %0 : vector<8x8x128xf32>
    %cst_10 = arith.constant dense<0.000000e+00> : vector<8x8xf32>
    %15 = vector.multi_reduction <add>, %14, %cst_10 [2] : vector<8x8x128xf32> to vector<8x8xf32>
    %cst_11 = arith.constant 1.000000e+03 : f32
    %16 = vector.broadcast %cst_11 : f32 to vector<8x8xf32>
    %17 = arith.mulf %16, %11 : vector<8x8xf32>
    %18 = arith.addf %15, %17 : vector<8x8xf32>
    %cst_12 = arith.constant dense<0xFF800000> : vector<8xf32>
    %19 = vector.multi_reduction <maximumf>, %18, %cst_12 [1] : vector<8x8xf32> to vector<8xf32>
    %20 = vector.shape_cast %19 : vector<8xf32> to vector<8x1xf32>
    %21 = vector.broadcast %20 : vector<8x1xf32> to vector<8x8xf32>
    %22 = arith.subf %18, %21 : vector<8x8xf32>
    %23 = math.exp %22 : vector<8x8xf32>
    %cst_13 = arith.constant dense<0.000000e+00> : vector<8xf32>
    %24 = vector.multi_reduction <add>, %23, %cst_13 [1] : vector<8x8xf32> to vector<8xf32>
    %25 = vector.shape_cast %24 : vector<8xf32> to vector<8x1xf32>
    %26 = tpu.reciprocal %25 : vector<8x1xf32> -> vector<8x1xf32>
    %27 = vector.broadcast %26 : vector<8x1xf32> to vector<8x8xf32>
    %28 = arith.mulf %23, %27 : vector<8x8xf32>
    %29 = vector.shape_cast %28 : vector<8x8xf32> to vector<8x8x1xf32>
    %30 = vector.broadcast %29 : vector<8x8x1xf32> to vector<8x8x128xf32>
    %31 = arith.mulf %0, %30 : vector<8x8x128xf32>
    %cst_14 = arith.constant dense<0.000000e+00> : vector<8x128xf32>
    %32 = vector.multi_reduction <add>, %31, %cst_14 [1] : vector<8x8x128xf32> to vector<8x128xf32>
    %c0_15 = arith.constant 0 : index
    %c0_16 = arith.constant 0 : index
    %33 = vector.load %arg6[%c0_15, %c0_16] : memref<8x128xf32, #tpu.memory_space<vmem>>, vector<8x128xf32>
    tpu.vector_store %arg6[%c0_15, %c0_16], %32 {strides = array<i32>} : memref<8x128xf32, #tpu.memory_space<vmem>>, vector<8x128xf32>,
    return
  }
  func.func @transform_0(%arg0: i32) -> (i32, i32) {
    %c0_i32 = arith.constant 0 : i32
    %c0_i32_0 = arith.constant 0 : i32
    return %arg0, %c0_i32 : i32, i32
  }
  func.func @transform_1(%arg0: i32) -> (i32, i32, i32) {
    %c0_i32 = arith.constant 0 : i32
    %c0_i32_0 = arith.constant 0 : i32
    %c0_i32_1 = arith.constant 0 : i32
    return %arg0, %c0_i32, %c0_i32_0 : i32, i32, i32
  }
  func.func @transform_2(%arg0: i32) -> (i32, i32) {
    %c0_i32 = arith.constant 0 : i32
    %c0_i32_0 = arith.constant 0 : i32
    return %arg0, %c0_i32 : i32, i32
  }
  func.func @transform_3(%arg0: i32) -> (i32, i32) {
    %c0_i32 = arith.constant 0 : i32
    %c0_i32_0 = arith.constant 0 : i32
    %c0_i32_1 = arith.constant 0 : i32
    return %c0_i32, %c0_i32_0 : i32, i32
  }
  func.func @transform_4(%arg0: i32) -> (i32, i32) {
    %c0_i32 = arith.constant 0 : i32
    %c0_i32_0 = arith.constant 0 : i32
    %c0_i32_1 = arith.constant 0 : i32
    return %c0_i32, %c0_i32_0 : i32, i32
  }
  func.func @transform_5(%arg0: i32) -> (i32, i32) {
    %c0_i32 = arith.constant 0 : i32
    %c0_i32_0 = arith.constant 0 : i32
    return %arg0, %c0_i32 : i32, i32
  }
}

</mosaic_0001>

<llo_original>
// kernel: tpu_custom_call.1
$region0: #{tpu_custom_call.1}
  #allocation0 [shape = 'u32[]', space=smem, size = 0x4, offset = 0x4, fixed_abs, tag = 'smem constant byte address 0x4 - core index']
  #allocation1 [shape = 'u32[72,128]{1,0:T(1,128)}', space=vmem, size = 0x9000, scoped, tag = 'internal scratch']
  %s0 = inlined_call_operand.hbm [shape: s32[8,8], index: 0, kind: input, shape index: {}]
  %s1 = inlined_call_operand.hbm [shape: f32[8,8,128], index: 1, kind: input, shape index: {}]
  %s2 = inlined_call_operand.hbm [shape: f32[8,128], index: 2, kind: input, shape index: {}]
  %s3 = inlined_call_operand.hbm [shape: f32[128,128], index: 3, kind: input, shape index: {}]
  %s4 = inlined_call_operand.vmem [shape: f32[1,128], index: 4, kind: input, shape index: {}]
  %s5 = inlined_call_operand.hbm [shape: f32[8,128], index: 5, kind: output, shape index: {}]
  %s6 = sld [smem:[#allocation0]]
  $region46: #{tpu_custom_call.1} parent=0
    _
  %s8 = ssub.s32 1, %s6
  %s9 = scalar_select 0, %s8, %s6
  $region1: #{tpu_custom_call.1} parent=0
    #allocation2 [shape = 'u8[4096]{0}', space=vmem, size = 0x1000, scoped, tag = 'input window, operand 0, single buffered']
    #allocation3 [shape = 's32[1]{0}', space=sflag, size = 0x4, scoped, tag = 'scoped memory for tpu_custom_call.1']
    #allocation4 [shape = 's32[1]{0}', space=sflag, size = 0x4, scoped, tag = 'scoped memory for tpu_custom_call.1']
    #allocation5 [shape = 'u8[32768]{0}', space=vmem, size = 0x8000, scoped, tag = 'input window, operand 1, single buffered']
    #allocation6 [shape = 's32[1]{0}', space=sflag, size = 0x4, scoped, tag = 'scoped memory for tpu_custom_call.1']
    #allocation7 [shape = 'u8[4096]{0}', space=vmem, size = 0x1000, scoped, tag = 'input window, operand 2, single buffered']
    #allocation8 [shape = 'u8[65536]{0}', space=vmem, size = 0x10000, scoped, tag = 'input window, operand 3, single buffered']
    #allocation9 [shape = 's32[1]{0}', space=sflag, size = 0x4, scoped, tag = 'scoped memory for tpu_custom_call.1']
    #allocation10 [shape = 'u8[4096]{0}', space=vmem, size = 0x1000, scoped, tag = 'output window, operand 0, single buffered']
    %10 = vsyncpa [#allocation3], 0
    %11 = vsyncpa [#allocation6], 0
    %12 = vsyncpa [#allocation9], 0
    %13 = vsyncpa [#allocation4], 0
    // Predicated region
    $region2: #{tpu_custom_call.1} parent=1 // pred_check
      _
    $region3: #{tpu_custom_call.1} parent=1 // pred_check_branch
      %15 = sbr.rel (0) target = $region5
    $region4: #{tpu_custom_call.1} parent=1 // pred_region
      %17 = vsyncadd [#allocation3], 0
      %s19 = sshll.u32 %s0, 4
      %s20 = int_to_ptr.hbm [resolvable:$true] %s19
      %s21 = sshll.u32 [#allocation2], 4
      %s22 = int_to_ptr.vmem [resolvable:$true] %s21
      %24 = dma.hbm_to_vmem [thread:$0]  %s20, 128, %s22, [#allocation3]
    $region5: #{tpu_custom_call.1} parent=1 // pred_fallthru
      _
    // Predicated region
    $region6: #{tpu_custom_call.1} parent=1 // pred_check
      _
    $region7: #{tpu_custom_call.1} parent=1 // pred_check_branch
      %26 = sbr.rel (0) target = $region9
    $region8: #{tpu_custom_call.1} parent=1 // pred_region
      %28 = vsyncadd [#allocation6], 0
      %s29 = sshll.u32 %s1, 4
      %s30 = int_to_ptr.hbm [resolvable:$true] %s29
      %s31 = sshll.u32 [#allocation5], 4
      %s32 = int_to_ptr.vmem [resolvable:$true] %s31
      %37 = dma.hbm_to_vmem [thread:$0]  %s30, 1024, %s32, [#allocation6], 128, 128, 8
    $region9: #{tpu_custom_call.1} parent=1 // pred_fallthru
      _
    // Predicated region
    $region10: #{tpu_custom_call.1} parent=1 // pred_check
      _
    $region11: #{tpu_custom_call.1} parent=1 // pred_check_branch
      %39 = sbr.rel (0) target = $region13
    $region12: #{tpu_custom_call.1} parent=1 // pred_region
      %41 = vsyncadd [#allocation6], 0
      %s43 = sshll.u32 %s2, 4
      %s44 = int_to_ptr.hbm [resolvable:$true] %s43
      %s45 = sshll.u32 [#allocation7], 4
      %s46 = int_to_ptr.vmem [resolvable:$true] %s45
      %48 = dma.hbm_to_vmem [thread:$0]  %s44, 128, %s46, [#allocation6]
    $region13: #{tpu_custom_call.1} parent=1 // pred_fallthru
      _
    // Predicated region
    $region14: #{tpu_custom_call.1} parent=1 // pred_check
      _
    $region15: #{tpu_custom_call.1} parent=1 // pred_check_branch
      %50 = sbr.rel (0) target = $region17
    $region16: #{tpu_custom_call.1} parent=1 // pred_region
      %52 = vsyncadd [#allocation9], 0
      %s53 = sshll.u32 %s3, 4
      %s54 = int_to_ptr.hbm [resolvable:$true] %s53
      %s55 = sshll.u32 [#allocation8], 4
      %s56 = int_to_ptr.vmem [resolvable:$true] %s55
      %61 = dma.hbm_to_vmem [thread:$0]  %s54, 2048, %s56, [#allocation9], 128, 128, 8
    $region17: #{tpu_custom_call.1} parent=1 // pred_fallthru
      _
    // Predicated region
    $region18: #{tpu_custom_call.1} parent=1 // pred_check
      _
    $region19: #{tpu_custom_call.1} parent=1 // pred_check_branch
      %63 = sbr.rel (0) target = $region21
    $region20: #{tpu_custom_call.1} parent=1 // pred_region
      _
    $region21: #{tpu_custom_call.1} parent=1 // pred_fallthru
      _
    // Predicated region
    $region22: #{tpu_custom_call.1} parent=1 // pred_check
      _
    $region23: #{tpu_custom_call.1} parent=1 // pred_check_branch
      %65 = sbr.rel (0) target = $region25
    $region24: #{tpu_custom_call.1} parent=1 // pred_region
      %67 = dma.done [#allocation3], 128
    $region25: #{tpu_custom_call.1} parent=1 // pred_fallthru
      _
    // Predicated region
    $region26: #{tpu_custom_call.1} parent=1 // pred_check
      _
    $region27: #{tpu_custom_call.1} parent=1 // pred_check_branch
      %69 = sbr.rel (0) target = $region29
    $region28: #{tpu_custom_call.1} parent=1 // pred_region
      %71 = dma.done [#allocation6], 1024
    $region29: #{tpu_custom_call.1} parent=1 // pred_fallthru
      _
    // Predicated region
    $region30: #{tpu_custom_call.1} parent=1 // pred_check
      _
    $region31: #{tpu_custom_call.1} parent=1 // pred_check_branch
      %73 = sbr.rel (0) target = $region33
    $region32: #{tpu_custom_call.1} parent=1 // pred_region
      %75 = dma.done [#allocation6], 128
    $region33: #{tpu_custom_call.1} parent=1 // pred_fallthru
      _
    // Predicated region
    $region34: #{tpu_custom_call.1} parent=1 // pred_check
      _
    $region35: #{tpu_custom_call.1} parent=1 // pred_check_branch
      %77 = sbr.rel (0) target = $region37
    $region36: #{tpu_custom_call.1} parent=1 // pred_region
      %79 = dma.done [#allocation9], 2048
    $region37: #{tpu_custom_call.1} parent=1 // pred_fallthru
      _
    %v80 = vld [vmem:[#allocation5] sm:$0xff]
    %v81 = vld [vmem:[#allocation5 + $0x8] sm:$0xff]
    %v82 = vld [vmem:[#allocation5 + $0x10] sm:$0xff]
    %v83 = vld [vmem:[#allocation5 + $0x18] sm:$0xff]
    %v84 = vld [vmem:[#allocation5 + $0x20] sm:$0xff]
    %v85 = vld [vmem:[#allocation5 + $0x28] sm:$0xff]
    %v86 = vld [vmem:[#allocation5 + $0x30] sm:$0xff]
    %v87 = vld [vmem:[#allocation5 + $0x38] sm:$0xff]
    %v88 = vld [vmem:[#allocation7] sm:$0xff]
    %v89 = vld [vmem:[#allocation8] sm:$0xff]
    %v90 = vld [vmem:[#allocation8 + $0x8] sm:$0xff]
    %v91 = vld [vmem:[#allocation8 + $0x10] sm:$0xff]
    %v92 = vld [vmem:[#allocation8 + $0x18] sm:$0xff]
    %v93 = vld [vmem:[#allocation8 + $0x20] sm:$0xff]
    %v94 = vld [vmem:[#allocation8 + $0x28] sm:$0xff]
    %v95 = vld [vmem:[#allocation8 + $0x30] sm:$0xff]
    %v96 = vld [vmem:[#allocation8 + $0x38] sm:$0xff]
    %v97 = vld [vmem:[#allocation8 + $0x40] sm:$0xff]
    %v98 = vld [vmem:[#allocation8 + $0x48] sm:$0xff]
    %v99 = vld [vmem:[#allocation8 + $0x50] sm:$0xff]
    %v100 = vld [vmem:[#allocation8 + $0x58] sm:$0xff]
    %v101 = vld [vmem:[#allocation8 + $0x60] sm:$0xff]
    %v102 = vld [vmem:[#allocation8 + $0x68] sm:$0xff]
    %v103 = vld [vmem:[#allocation8 + $0x70] sm:$0xff]
    %v104 = vld [vmem:[#allocation8 + $0x78] sm:$0xff]
    %v105 = vld [vmem:[%s4] sm:$0x1]
    %v107 = vperm.slane %v105, 0
    %v109 = vand.u32 %v104, 4294901760
    %110 = vmatpush.msra.mxu0 %v109
    %v111 = vand.u32 %v103, 4294901760
    %112 = vmatpush.msra.mxu0 %v111
    %v113 = vand.u32 %v102, 4294901760
    %114 = vmatpush.msra.mxu0 %v113
    %v115 = vand.u32 %v101, 4294901760
    %116 = vmatpush.msra.mxu0 %v115
    %v117 = vand.u32 %v100, 4294901760
    %118 = vmatpush.msra.mxu0 %v117
    %v119 = vand.u32 %v99, 4294901760
    %120 = vmatpush.msra.mxu0 %v119
    %v121 = vand.u32 %v98, 4294901760
    %122 = vmatpush.msra.mxu0 %v121
    %v123 = vand.u32 %v97, 4294901760
    %124 = vmatpush.msra.mxu0 %v123
    %v125 = vand.u32 %v96, 4294901760
    %126 = vmatpush.msra.mxu0 %v125
    %v127 = vand.u32 %v95, 4294901760
    %128 = vmatpush.msra.mxu0 %v127
    %v129 = vand.u32 %v94, 4294901760
    %130 = vmatpush.msra.mxu0 %v129
    %v131 = vand.u32 %v93, 4294901760
    %132 = vmatpush.msra.mxu0 %v131
    %v133 = vand.u32 %v92, 4294901760
    %134 = vmatpush.msra.mxu0 %v133
    %v135 = vand.u32 %v91, 4294901760
    %136 = vmatpush.msra.mxu0 %v135
    %v137 = vand.u32 %v90, 4294901760
    %138 = vmatpush.msra.mxu0 %v137
    %v139 = vand.u32 %v89, 4294901760
    %140 = vmatpush.msra.mxu0 %v139
    %v141 = vand.u32 %v88, 4294901760
    %v142 = vsub.f32 %v88, %v141
    %v143 = vand.u32 %v142, 4294901760
    %v144 = vsub.f32 %v142, %v143
    %v145 = vand.u32 %v144, 4294901760
    %146 = vmatmul.f32.gmra.mxu0 %v145
    %v147 = vpop.f32.mrf.mxu0
    %v148 = vadd.f32 %v107, %v147
    %149 = vdwg.mxu0
    %v150 = vand.u32 %v104, 4294901760
    %v151 = vsub.f32 %v104, %v150
    %v152 = vand.u32 %v151, 4294901760
    %v153 = vsub.f32 %v151, %v152
    %v154 = vand.u32 %v153, 4294901760
    %155 = vmatpush.msra.mxu0 %v154
    %v156 = vand.u32 %v103, 4294901760
    %v157 = vsub.f32 %v103, %v156
    %v158 = vand.u32 %v157, 4294901760
    %v159 = vsub.f32 %v157, %v158
    %v160 = vand.u32 %v159, 4294901760
    %161 = vmatpush.msra.mxu0 %v160
    %v162 = vand.u32 %v102, 4294901760
    %v163 = vsub.f32 %v102, %v162
    %v164 = vand.u32 %v163, 4294901760
    %v165 = vsub.f32 %v163, %v164
    %v166 = vand.u32 %v165, 4294901760
    %167 = vmatpush.msra.mxu0 %v166
    %v168 = vand.u32 %v101, 4294901760
    %v169 = vsub.f32 %v101, %v168
    %v170 = vand.u32 %v169, 4294901760
    %v171 = vsub.f32 %v169, %v170
    %v172 = vand.u32 %v171, 4294901760
    %173 = vmatpush.msra.mxu0 %v172
    %v174 = vand.u32 %v100, 4294901760
    %v175 = vsub.f32 %v100, %v174
    %v176 = vand.u32 %v175, 4294901760
    %v177 = vsub.f32 %v175, %v176
    %v178 = vand.u32 %v177, 4294901760
    %179 = vmatpush.msra.mxu0 %v178
    %v180 = vand.u32 %v99, 4294901760
    %v181 = vsub.f32 %v99, %v180
    %v182 = vand.u32 %v181, 4294901760
    %v183 = vsub.f32 %v181, %v182
    %v184 = vand.u32 %v183, 4294901760
    %185 = vmatpush.msra.mxu0 %v184
    %v186 = vand.u32 %v98, 4294901760
    %v187 = vsub.f32 %v98, %v186
    %v188 = vand.u32 %v187, 4294901760
    %v189 = vsub.f32 %v187, %v188
    %v190 = vand.u32 %v189, 4294901760
    %191 = vmatpush.msra.mxu0 %v190
    %v192 = vand.u32 %v97, 4294901760
    %v193 = vsub.f32 %v97, %v192
    %v194 = vand.u32 %v193, 4294901760
    %v195 = vsub.f32 %v193, %v194
    %v196 = vand.u32 %v195, 4294901760
    %197 = vmatpush.msra.mxu0 %v196
    %v198 = vand.u32 %v96, 4294901760
    %v199 = vsub.f32 %v96, %v198
    %v200 = vand.u32 %v199, 4294901760
    %v201 = vsub.f32 %v199, %v200
    %v202 = vand.u32 %v201, 4294901760
    %203 = vmatpush.msra.mxu0 %v202
    %v204 = vand.u32 %v95, 4294901760
    %v205 = vsub.f32 %v95, %v204
    %v206 = vand.u32 %v205, 4294901760
    %v207 = vsub.f32 %v205, %v206
    %v208 = vand.u32 %v207, 4294901760
    %209 = vmatpush.msra.mxu0 %v208
    %v210 = vand.u32 %v94, 4294901760
    %v211 = vsub.f32 %v94, %v210
    %v212 = vand.u32 %v211, 4294901760
    %v213 = vsub.f32 %v211, %v212
    %v214 = vand.u32 %v213, 4294901760
    %215 = vmatpush.msra.mxu0 %v214
    %v216 = vand.u32 %v93, 4294901760
    %v217 = vsub.f32 %v93, %v216
    %v218 = vand.u32 %v217, 4294901760
    %v219 = vsub.f32 %v217, %v218
    %v220 = vand.u32 %v219, 4294901760
    %221 = vmatpush.msra.mxu0 %v220
    %v222 = vand.u32 %v92, 4294901760
    %v223 = vsub.f32 %v92, %v222
    %v224 = vand.u32 %v223, 4294901760
    %v225 = vsub.f32 %v223, %v224
    %v226 = vand.u32 %v225, 4294901760
    %227 = vmatpush.msra.mxu0 %v226
    %v228 = vand.u32 %v91, 4294901760
    %v229 = vsub.f32 %v91, %v228
    %v230 = vand.u32 %v229, 4294901760
    %v231 = vsub.f32 %v229, %v230
    %v232 = vand.u32 %v231, 4294901760
    %233 = vmatpush.msra.mxu0 %v232
    %v234 = vand.u32 %v90, 4294901760
    %v235 = vsub.f32 %v90, %v234
    %v236 = vand.u32 %v235, 4294901760
    %v237 = vsub.f32 %v235, %v236
    %v238 = vand.u32 %v237, 4294901760
    %239 = vmatpush.msra.mxu0 %v238
    %v240 = vand.u32 %v89, 4294901760
    %v241 = vsub.f32 %v89, %v240
    %v242 = vand.u32 %v241, 4294901760
    %v243 = vsub.f32 %v241, %v242
    %v244 = vand.u32 %v243, 4294901760
    %245 = vmatpush.msra.mxu0 %v244
    %v246 = vand.u32 %v88, 4294901760
    %247 = vmatmul.f32.gmra.mxu0 %v246
    %v248 = vpop.f32.mrf.mxu0
    %v249 = vadd.f32 %v148, %v248
    %250 = vdwg.mxu0
    %v251 = vand.u32 %v104, 4294901760
    %v252 = vsub.f32 %v104, %v251
    %253 = vmatpush.msra.mxu0 %v252
    %v254 = vand.u32 %v103, 4294901760
    %v255 = vsub.f32 %v103, %v254
    %256 = vmatpush.msra.mxu0 %v255
    %v257 = vand.u32 %v102, 4294901760
    %v258 = vsub.f32 %v102, %v257
    %259 = vmatpush.msra.mxu0 %v258
    %v260 = vand.u32 %v101, 4294901760
    %v261 = vsub.f32 %v101, %v260
    %262 = vmatpush.msra.mxu0 %v261
    %v263 = vand.u32 %v100, 4294901760
    %v264 = vsub.f32 %v100, %v263
    %265 = vmatpush.msra.mxu0 %v264
    %v266 = vand.u32 %v99, 4294901760
    %v267 = vsub.f32 %v99, %v266
    %268 = vmatpush.msra.mxu0 %v267
    %v269 = vand.u32 %v98, 4294901760
    %v270 = vsub.f32 %v98, %v269
    %271 = vmatpush.msra.mxu0 %v270
    %v272 = vand.u32 %v97, 4294901760
    %v273 = vsub.f32 %v97, %v272
    %274 = vmatpush.msra.mxu0 %v273
    %v275 = vand.u32 %v96, 4294901760
    %v276 = vsub.f32 %v96, %v275
    %277 = vmatpush.msra.mxu0 %v276
    %v278 = vand.u32 %v95, 4294901760
    %v279 = vsub.f32 %v95, %v278
    %280 = vmatpush.msra.mxu0 %v279
    %v281 = vand.u32 %v94, 4294901760
    %v282 = vsub.f32 %v94, %v281
    %283 = vmatpush.msra.mxu0 %v282
    %v284 = vand.u32 %v93, 4294901760
    %v285 = vsub.f32 %v93, %v284
    %286 = vmatpush.msra.mxu0 %v285
    %v287 = vand.u32 %v92, 4294901760
    %v288 = vsub.f32 %v92, %v287
    %289 = vmatpush.msra.mxu0 %v288
    %v290 = vand.u32 %v91, 4294901760
    %v291 = vsub.f32 %v91, %v290
    %292 = vmatpush.msra.mxu0 %v291
    %v293 = vand.u32 %v90, 4294901760
    %v294 = vsub.f32 %v90, %v293
    %295 = vmatpush.msra.mxu0 %v294
    %v296 = vand.u32 %v89, 4294901760
    %v297 = vsub.f32 %v89, %v296
    %298 = vmatpush.msra.mxu0 %v297
    %v299 = vand.u32 %v88, 4294901760
    %v300 = vsub.f32 %v88, %v299
    %301 = vmatmul.f32.gmra.mxu0 %v300
    %v302 = vpop.f32.mrf.mxu0
    %v303 = vadd.f32 %v249, %v302
    %304 = vdwg.mxu0
    %v305 = vand.u32 %v104, 4294901760
    %306 = vmatpush.msra.mxu0 %v305
    %v307 = vand.u32 %v103, 4294901760
    %308 = vmatpush.msra.mxu0 %v307
    %v309 = vand.u32 %v102, 4294901760
    %310 = vmatpush.msra.mxu0 %v309
    %v311 = vand.u32 %v101, 4294901760
    %312 = vmatpush.msra.mxu0 %v311
    %v313 = vand.u32 %v100, 4294901760
    %314 = vmatpush.msra.mxu0 %v313
    %v315 = vand.u32 %v99, 4294901760
    %316 = vmatpush.msra.mxu0 %v315
    %v317 = vand.u32 %v98, 4294901760
    %318 = vmatpush.msra.mxu0 %v317
    %v319 = vand.u32 %v97, 4294901760
    %320 = vmatpush.msra.mxu0 %v319
    %v321 = vand.u32 %v96, 4294901760
    %322 = vmatpush.msra.mxu0 %v321
    %v323 = vand.u32 %v95, 4294901760
    %324 = vmatpush.msra.mxu0 %v323
    %v325 = vand.u32 %v94, 4294901760
    %326 = vmatpush.msra.mxu0 %v325
    %v327 = vand.u32 %v93, 4294901760
    %328 = vmatpush.msra.mxu0 %v327
    %v329 = vand.u32 %v92, 4294901760
    %330 = vmatpush.msra.mxu0 %v329
    %v331 = vand.u32 %v91, 4294901760
    %332 = vmatpush.msra.mxu0 %v331
    %v333 = vand.u32 %v90, 4294901760
    %334 = vmatpush.msra.mxu0 %v333
    %v335 = vand.u32 %v89, 4294901760
    %336 = vmatpush.msra.mxu0 %v335
    %v337 = vand.u32 %v88, 4294901760
    %v338 = vsub.f32 %v88, %v337
    %v339 = vand.u32 %v338, 4294901760
    %340 = vmatmul.f32.gmra.mxu0 %v339
    %v341 = vpop.f32.mrf.mxu0
    %v342 = vadd.f32 %v303, %v341
    %343 = vdwg.mxu0
    %v344 = vand.u32 %v104, 4294901760
    %v345 = vsub.f32 %v104, %v344
    %v346 = vand.u32 %v345, 4294901760
    %347 = vmatpush.msra.mxu0 %v346
    %v348 = vand.u32 %v103, 4294901760
    %v349 = vsub.f32 %v103, %v348
    %v350 = vand.u32 %v349, 4294901760
    %351 = vmatpush.msra.mxu0 %v350
    %v352 = vand.u32 %v102, 4294901760
    %v353 = vsub.f32 %v102, %v352
    %v354 = vand.u32 %v353, 4294901760
    %355 = vmatpush.msra.mxu0 %v354
    %v356 = vand.u32 %v101, 4294901760
    %v357 = vsub.f32 %v101, %v356
    %v358 = vand.u32 %v357, 4294901760
    %359 = vmatpush.msra.mxu0 %v358
    %v360 = vand.u32 %v100, 4294901760
    %v361 = vsub.f32 %v100, %v360
    %v362 = vand.u32 %v361, 4294901760
    %363 = vmatpush.msra.mxu0 %v362
    %v364 = vand.u32 %v99, 4294901760
    %v365 = vsub.f32 %v99, %v364
    %v366 = vand.u32 %v365, 4294901760
    %367 = vmatpush.msra.mxu0 %v366
    %v368 = vand.u32 %v98, 4294901760
    %v369 = vsub.f32 %v98, %v368
    %v370 = vand.u32 %v369, 4294901760
    %371 = vmatpush.msra.mxu0 %v370
    %v372 = vand.u32 %v97, 4294901760
    %v373 = vsub.f32 %v97, %v372
    %v374 = vand.u32 %v373, 4294901760
    %375 = vmatpush.msra.mxu0 %v374
    %v376 = vand.u32 %v96, 4294901760
    %v377 = vsub.f32 %v96, %v376
    %v378 = vand.u32 %v377, 4294901760
    %379 = vmatpush.msra.mxu0 %v378
    %v380 = vand.u32 %v95, 4294901760
    %v381 = vsub.f32 %v95, %v380
    %v382 = vand.u32 %v381, 4294901760
    %383 = vmatpush.msra.mxu0 %v382
    %v384 = vand.u32 %v94, 4294901760
    %v385 = vsub.f32 %v94, %v384
    %v386 = vand.u32 %v385, 4294901760
    %387 = vmatpush.msra.mxu0 %v386
    %v388 = vand.u32 %v93, 4294901760
    %v389 = vsub.f32 %v93, %v388
    %v390 = vand.u32 %v389, 4294901760
    %391 = vmatpush.msra.mxu0 %v390
    %v392 = vand.u32 %v92, 4294901760
    %v393 = vsub.f32 %v92, %v392
    %v394 = vand.u32 %v393, 4294901760
    %395 = vmatpush.msra.mxu0 %v394
    %v396 = vand.u32 %v91, 4294901760
    %v397 = vsub.f32 %v91, %v396
    %v398 = vand.u32 %v397, 4294901760
    %399 = vmatpush.msra.mxu0 %v398
    %v400 = vand.u32 %v90, 4294901760
    %v401 = vsub.f32 %v90, %v400
    %v402 = vand.u32 %v401, 4294901760
    %403 = vmatpush.msra.mxu0 %v402
    %v404 = vand.u32 %v89, 4294901760
    %v405 = vsub.f32 %v89, %v404
    %v406 = vand.u32 %v405, 4294901760
    %407 = vmatpush.msra.mxu0 %v406
    %v408 = vand.u32 %v88, 4294901760
    %409 = vmatmul.f32.gmra.mxu0 %v408
    %v410 = vpop.f32.mrf.mxu0
    %v411 = vadd.f32 %v342, %v410
    %412 = vdwg.mxu0
    %v413 = vand.u32 %v104, 4294901760
    %414 = vmatpush.msra.mxu0 %v413
    %v415 = vand.u32 %v103, 4294901760
    %416 = vmatpush.msra.mxu0 %v415
    %v417 = vand.u32 %v102, 4294901760
    %418 = vmatpush.msra.mxu0 %v417
    %v419 = vand.u32 %v101, 4294901760
    %420 = vmatpush.msra.mxu0 %v419
    %v421 = vand.u32 %v100, 4294901760
    %422 = vmatpush.msra.mxu0 %v421
    %v423 = vand.u32 %v99, 4294901760
    %424 = vmatpush.msra.mxu0 %v423
    %v425 = vand.u32 %v98, 4294901760
    %426 = vmatpush.msra.mxu0 %v425
    %v427 = vand.u32 %v97, 4294901760
    %428 = vmatpush.msra.mxu0 %v427
    %v429 = vand.u32 %v96, 4294901760
    %430 = vmatpush.msra.mxu0 %v429
    %v431 = vand.u32 %v95, 4294901760
    %432 = vmatpush.msra.mxu0 %v431
    %v433 = vand.u32 %v94, 4294901760
    %434 = vmatpush.msra.mxu0 %v433
    %v435 = vand.u32 %v93, 4294901760
    %436 = vmatpush.msra.mxu0 %v435
    %v437 = vand.u32 %v92, 4294901760
    %438 = vmatpush.msra.mxu0 %v437
    %v439 = vand.u32 %v91, 4294901760
    %440 = vmatpush.msra.mxu0 %v439
    %v441 = vand.u32 %v90, 4294901760
    %442 = vmatpush.msra.mxu0 %v441
    %v443 = vand.u32 %v89, 4294901760
    %444 = vmatpush.msra.mxu0 %v443
    %v445 = vand.u32 %v88, 4294901760
    %446 = vmatmul.f32.gmra.mxu0 %v445
    %v447 = vpop.f32.mrf.mxu0
    %v448 = vadd.f32 %v411, %v447
    %449 = vdwg.mxu0
    %v450 = vld [vmem:[#allocation2] sm:$0xff]
    %vm451 = vcmp.ne.s32.totalorder %v450, 0
    %v452 = vsel %vm451, 1, 0
    %v453 = vcvt.s32.f32 %v452
    %v455 = vrot.slane %v448, 1
    %v456 = vrot.slane %v448, 2
    %v457 = vrot.slane %v448, 3
    %v458 = vrot.slane %v448, 4
    %v459 = vrot.slane %v448, 5
    %v460 = vrot.slane %v448, 6
    %v461 = vrot.slane %v448, 7
    %v462 = vperm.slane %v448, 0
    %v463 = vperm.slane %v455, 0
    %v464 = vperm.slane %v456, 0
    %v465 = vperm.slane %v457, 0
    %v466 = vperm.slane %v458, 0
    %v467 = vperm.slane %v459, 0
    %v468 = vperm.slane %v460, 0
    %v469 = vperm.slane %v461, 0
    %v478 = vmul.f32 %v462, %v80
    %v479 = vmul.f32 %v463, %v81
    %v480 = vmul.f32 %v464, %v82
    %v481 = vmul.f32 %v465, %v83
    %v482 = vmul.f32 %v466, %v84
    %v483 = vmul.f32 %v467, %v85
    %v484 = vmul.f32 %v468, %v86
    %v485 = vmul.f32 %v469, %v87
    %486 = vadd.xlane.f32.xlu0 %v478
    %v487 = vpop.xlane.xlu0 %486
    %488 = vadd.xlane.f32.xlu0 %v479
    %v489 = vpop.xlane.xlu0 %488
    %490 = vadd.xlane.f32.xlu0 %v480
    %v491 = vpop.xlane.xlu0 %490
    %492 = vadd.xlane.f32.xlu0 %v481
    %v493 = vpop.xlane.xlu0 %492
    %494 = vadd.xlane.f32.xlu0 %v482
    %v495 = vpop.xlane.xlu0 %494
    %496 = vadd.xlane.f32.xlu0 %v483
    %v497 = vpop.xlane.xlu0 %496
    %498 = vadd.xlane.f32.xlu0 %v484
    %v499 = vpop.xlane.xlu0 %498
    %500 = vadd.xlane.f32.xlu0 %v485
    %v501 = vpop.xlane.xlu0 %500
    %v502 = vmul.f32 %v453, 1000.0
    %v504 = vperm.slane %v502, 0
    %v505 = vlaneseq
    %v506 = vshrl.u32 %v505, 7
    %508 = vset.pattern.permute.xlu0 %v506
    %509 = vperm.xlu0 %508, %v504
    %v510 = vpop.permute.xlu0 %509
    %v511 = vperm.slane %v502, 1
    %v512 = vlaneseq
    %v513 = vshrl.u32 %v512, 7
    %515 = vset.pattern.permute.xlu0 %v513
    %516 = vperm.xlu0 %515, %v511
    %v517 = vpop.permute.xlu0 %516
    %v518 = vperm.slane %v502, 2
    %v519 = vlaneseq
    %v520 = vshrl.u32 %v519, 7
    %522 = vset.pattern.permute.xlu0 %v520
    %523 = vperm.xlu0 %522, %v518
    %v524 = vpop.permute.xlu0 %523
    %v525 = vperm.slane %v502, 3
    %v526 = vlaneseq
    %v527 = vshrl.u32 %v526, 7
    %529 = vset.pattern.permute.xlu0 %v527
    %530 = vperm.xlu0 %529, %v525
    %v531 = vpop.permute.xlu0 %530
    %v532 = vperm.slane %v502, 4
    %v533 = vlaneseq
    %v534 = vshrl.u32 %v533, 7
    %536 = vset.pattern.permute.xlu0 %v534
    %537 = vperm.xlu0 %536, %v532
    %v538 = vpop.permute.xlu0 %537
    %v539 = vperm.slane %v502, 5
    %v540 = vlaneseq
    %v541 = vshrl.u32 %v540, 7
    %543 = vset.pattern.permute.xlu0 %v541
    %544 = vperm.xlu0 %543, %v539
    %v545 = vpop.permute.xlu0 %544
    %v546 = vperm.slane %v502, 6
    %v547 = vlaneseq
    %v548 = vshrl.u32 %v547, 7
    %550 = vset.pattern.permute.xlu0 %v548
    %551 = vperm.xlu0 %550, %v546
    %v552 = vpop.permute.xlu0 %551
    %v553 = vperm.slane %v502, 7
    %v554 = vlaneseq
    %v555 = vshrl.u32 %v554, 7
    %557 = vset.pattern.permute.xlu0 %v555
    %558 = vperm.xlu0 %557, %v553
    %v559 = vpop.permute.xlu0 %558
    %v568 = vadd.f32 %v487, %v510
    %v569 = vadd.f32 %v489, %v517
    %v570 = vadd.f32 %v491, %v524
    %v571 = vadd.f32 %v493, %v531
    %v572 = vadd.f32 %v495, %v538
    %v573 = vadd.f32 %v497, %v545
    %v574 = vadd.f32 %v499, %v552
    %v575 = vadd.f32 %v501, %v559
    %584 = vset.pattern.permute.xlu0 0
    %585 = vperm.xlu0 %584, %v568
    %v586 = vpop.permute.xlu0 %585
    %587 = vset.pattern.permute.xlu0 0
    %588 = vperm.xlu0 %587, %v569
    %v589 = vpop.permute.xlu0 %588
    %590 = vset.pattern.permute.xlu0 0
    %591 = vperm.xlu0 %590, %v570
    %v592 = vpop.permute.xlu0 %591
    %593 = vset.pattern.permute.xlu0 0
    %594 = vperm.xlu0 %593, %v571
    %v595 = vpop.permute.xlu0 %594
    %596 = vset.pattern.permute.xlu0 0
    %597 = vperm.xlu0 %596, %v572
    %v598 = vpop.permute.xlu0 %597
    %599 = vset.pattern.permute.xlu0 0
    %600 = vperm.xlu0 %599, %v573
    %v601 = vpop.permute.xlu0 %600
    %602 = vset.pattern.permute.xlu0 0
    %603 = vperm.xlu0 %602, %v574
    %v604 = vpop.permute.xlu0 %603
    %605 = vset.pattern.permute.xlu0 0
    %606 = vperm.xlu0 %605, %v575
    %v607 = vpop.permute.xlu0 %606
    %v608 = vlaneseq
    %v609 = vand.u32 %v608, 127
    %v610 = vperm.slane %v586, %v609
    %v611 = vperm.slane %v589, %v609
    %v612 = vperm.slane %v592, %v609
    %v613 = vperm.slane %v595, %v609
    %v614 = vperm.slane %v598, %v609
    %v615 = vperm.slane %v601, %v609
    %v616 = vperm.slane %v604, %v609
    %v617 = vperm.slane %v607, %v609
    %vm618 = vcmask 1041409
    %v619 = vsel %vm618, %v611, %v610
    %vm620 = vcmask 1042434
    %v621 = vsel %vm620, %v612, %v619
    %vm622 = vcmask 1043459
    %v623 = vsel %vm622, %v613, %v621
    %vm624 = vcmask 1044484
    %v625 = vsel %vm624, %v614, %v623
    %vm626 = vcmask 1045509
    %v627 = vsel %vm626, %v615, %v625
    %vm628 = vcmask 1046534
    %v629 = vsel %vm628, %v616, %v627
    %vm630 = vcmask 1047559
    %v631 = vsel %vm630, %v617, %v629
    %vm633 = vcmask 64512
    %v634 = vsel %vm633, %v631, -inf
    %635 = vmax.xlane.f32.xlu0 %v634
    %v636 = vpop.xlane.xlu0 %635
    %v638 = vperm.slane %v636, 0
    %v639 = vperm.slane %v636, 1
    %v640 = vperm.slane %v636, 2
    %v641 = vperm.slane %v636, 3
    %v642 = vperm.slane %v636, 4
    %v643 = vperm.slane %v636, 5
    %v644 = vperm.slane %v636, 6
    %v645 = vperm.slane %v636, 7
    %v654 = vsub.f32 %v568, %v638
    %v655 = vsub.f32 %v569, %v639
    %v656 = vsub.f32 %v570, %v640
    %v657 = vsub.f32 %v571, %v641
    %v658 = vsub.f32 %v572, %v642
    %v659 = vsub.f32 %v573, %v643
    %v660 = vsub.f32 %v574, %v644
    %v661 = vsub.f32 %v575, %v645
    %v662 = vmul.f32 %v654, 1.442695
    %v663 = vpow.pop %v662
    %v664 = vmul.f32 %v655, 1.442695
    %v665 = vpow.pop %v664
    %v666 = vmul.f32 %v656, 1.442695
    %v667 = vpow.pop %v666
    %v668 = vmul.f32 %v657, 1.442695
    %v669 = vpow.pop %v668
    %v670 = vmul.f32 %v658, 1.442695
    %v671 = vpow.pop %v670
    %v672 = vmul.f32 %v659, 1.442695
    %v673 = vpow.pop %v672
    %v674 = vmul.f32 %v660, 1.442695
    %v675 = vpow.pop %v674
    %v676 = vmul.f32 %v661, 1.442695
    %v677 = vpow.pop %v676
    %686 = vset.pattern.permute.xlu0 0
    %687 = vperm.xlu0 %686, %v663
    %v688 = vpop.permute.xlu0 %687
    %689 = vset.pattern.permute.xlu0 0
    %690 = vperm.xlu0 %689, %v665
    %v691 = vpop.permute.xlu0 %690
    %692 = vset.pattern.permute.xlu0 0
    %693 = vperm.xlu0 %692, %v667
    %v694 = vpop.permute.xlu0 %693
    %695 = vset.pattern.permute.xlu0 0
    %696 = vperm.xlu0 %695, %v669
    %v697 = vpop.permute.xlu0 %696
    %698 = vset.pattern.permute.xlu0 0
    %699 = vperm.xlu0 %698, %v671
    %v700 = vpop.permute.xlu0 %699
    %701 = vset.pattern.permute.xlu0 0
    %702 = vperm.xlu0 %701, %v673
    %v703 = vpop.permute.xlu0 %702
    %704 = vset.pattern.permute.xlu0 0
    %705 = vperm.xlu0 %704, %v675
    %v706 = vpop.permute.xlu0 %705
    %707 = vset.pattern.permute.xlu0 0
    %708 = vperm.xlu0 %707, %v677
    %v709 = vpop.permute.xlu0 %708
    %v710 = vperm.slane %v688, %v609
    %v711 = vperm.slane %v691, %v609
    %v712 = vperm.slane %v694, %v609
    %v713 = vperm.slane %v697, %v609
    %v714 = vperm.slane %v700, %v609
    %v715 = vperm.slane %v703, %v609
    %v716 = vperm.slane %v706, %v609
    %v717 = vperm.slane %v709, %v609
    %v718 = vsel %vm618, %v711, %v710
    %v719 = vsel %vm620, %v712, %v718
    %v720 = vsel %vm622, %v713, %v719
    %v721 = vsel %vm624, %v714, %v720
    %v722 = vsel %vm626, %v715, %v721
    %v723 = vsel %vm628, %v716, %v722
    %v724 = vsel %vm630, %v717, %v723
    %v726 = vsel %vm633, %v724, 0.0
    %727 = vadd.xlane.f32.xlu0 %v726
    %v728 = vpop.xlane.xlu0 %727
    %v729 = vrcp.pop %v728
    %v730 = vmul.f32 %v728, %v729
    %v731 = vsub.f32 1.0, %v730
    %v732 = vmul.f32 %v729, %v731
    %v733 = vadd.f32 %v729, %v732
    %vm734 = vweird.f32 %v728
    %vm735 = vweird.f32 %v729
    %vm736 = vmor %vm734, %vm735
    %v737 = vsel %vm736, %v729, %v733
    %v738 = vand.u32 2147483647, %v728
    %vm739 = vcmp.eq.f32.partialorder %v738, 8.507059e+37
    %v740 = vand.u32 %v728, 2147483648
    %v741 = vor.u32 1.1754944e-38, %v740
    %v742 = vsel %vm739, %v741, %v737
    %v744 = vperm.slane %v742, 0
    %v745 = vperm.slane %v742, 1
    %v746 = vperm.slane %v742, 2
    %v747 = vperm.slane %v742, 3
    %v748 = vperm.slane %v742, 4
    %v749 = vperm.slane %v742, 5
    %v750 = vperm.slane %v742, 6
    %v751 = vperm.slane %v742, 7
    %v760 = vmul.f32 %v663, %v744
    %v761 = vmul.f32 %v665, %v745
    %v762 = vmul.f32 %v667, %v746
    %v763 = vmul.f32 %v669, %v747
    %v764 = vmul.f32 %v671, %v748
    %v765 = vmul.f32 %v673, %v749
    %v766 = vmul.f32 %v675, %v750
    %v767 = vmul.f32 %v677, %v751
    %769 = vset.pattern.permute.xlu0 0
    %770 = vperm.xlu0 %769, %v760
    %v771 = vpop.permute.xlu0 %770
    %774 = vset.pattern.permute.xlu0 0
    %775 = vperm.xlu0 %774, %v761
    %v776 = vpop.permute.xlu0 %775
    %779 = vset.pattern.permute.xlu0 0
    %780 = vperm.xlu0 %779, %v762
    %v781 = vpop.permute.xlu0 %780
    %784 = vset.pattern.permute.xlu0 0
    %785 = vperm.xlu0 %784, %v763
    %v786 = vpop.permute.xlu0 %785
    %789 = vset.pattern.permute.xlu0 0
    %790 = vperm.xlu0 %789, %v764
    %v791 = vpop.permute.xlu0 %790
    %794 = vset.pattern.permute.xlu0 0
    %795 = vperm.xlu0 %794, %v765
    %v796 = vpop.permute.xlu0 %795
    %799 = vset.pattern.permute.xlu0 0
    %800 = vperm.xlu0 %799, %v766
    %v801 = vpop.permute.xlu0 %800
    %804 = vset.pattern.permute.xlu0 0
    %805 = vperm.xlu0 %804, %v767
    %v806 = vpop.permute.xlu0 %805
    %v808 = vmul.f32 %v80, %v771
    %v809 = vmul.f32 %v81, %v776
    %v810 = vmul.f32 %v82, %v781
    %v811 = vmul.f32 %v83, %v786
    %v812 = vmul.f32 %v84, %v791
    %v813 = vmul.f32 %v85, %v796
    %v814 = vmul.f32 %v86, %v801
    %v815 = vmul.f32 %v87, %v806
    %v816 = vrot.slane %v808, 4
    %v817 = vadd.f32 %v808, %v816
    %v818 = vrot.slane %v817, 2
    %v819 = vadd.f32 %v817, %v818
    %v820 = vrot.slane %v819, 1
    %v821 = vadd.f32 %v819, %v820
    %v822 = vrot.slane %v809, 4
    %v823 = vadd.f32 %v809, %v822
    %v824 = vrot.slane %v823, 2
    %v825 = vadd.f32 %v823, %v824
    %v826 = vrot.slane %v825, 1
    %v827 = vadd.f32 %v825, %v826
    %v828 = vrot.slane %v810, 4
    %v829 = vadd.f32 %v810, %v828
    %v830 = vrot.slane %v829, 2
    %v831 = vadd.f32 %v829, %v830
    %v832 = vrot.slane %v831, 1
    %v833 = vadd.f32 %v831, %v832
    %v834 = vrot.slane %v811, 4
    %v835 = vadd.f32 %v811, %v834
    %v836 = vrot.slane %v835, 2
    %v837 = vadd.f32 %v835, %v836
    %v838 = vrot.slane %v837, 1
    %v839 = vadd.f32 %v837, %v838
    %v840 = vrot.slane %v812, 4
    %v841 = vadd.f32 %v812, %v840
    %v842 = vrot.slane %v841, 2
    %v843 = vadd.f32 %v841, %v842
    %v844 = vrot.slane %v843, 1
    %v845 = vadd.f32 %v843, %v844
    %v846 = vrot.slane %v813, 4
    %v847 = vadd.f32 %v813, %v846
    %v848 = vrot.slane %v847, 2
    %v849 = vadd.f32 %v847, %v848
    %v850 = vrot.slane %v849, 1
    %v851 = vadd.f32 %v849, %v850
    %v852 = vrot.slane %v814, 4
    %v853 = vadd.f32 %v814, %v852
    %v854 = vrot.slane %v853, 2
    %v855 = vadd.f32 %v853, %v854
    %v856 = vrot.slane %v855, 1
    %v857 = vadd.f32 %v855, %v856
    %v858 = vrot.slane %v815, 4
    %v859 = vadd.f32 %v815, %v858
    %v860 = vrot.slane %v859, 2
    %v861 = vadd.f32 %v859, %v860
    %v862 = vrot.slane %v861, 1
    %v863 = vadd.f32 %v861, %v862
    %v872 = vsel %vm618, %v827, %v821
    %v873 = vsel %vm620, %v833, %v872
    %v874 = vsel %vm622, %v839, %v873
    %v875 = vsel %vm624, %v845, %v874
    %v876 = vsel %vm626, %v851, %v875
    %v877 = vsel %vm628, %v857, %v876
    %v878 = vsel %vm630, %v863, %v877
    %880 = vst [vmem:[#allocation10] sm:$0xff] %v878
    // Predicated region
    $region38: #{tpu_custom_call.1} parent=1 // pred_check
      _
    $region39: #{tpu_custom_call.1} parent=1 // pred_check_branch
      %882 = sbr.rel (0) target = $region41
    $region40: #{tpu_custom_call.1} parent=1 // pred_region
      %884 = vsyncadd [#allocation4], 0
      %s886 = sshll.u32 [#allocation10], 4
      %s887 = int_to_ptr.vmem [resolvable:$true] %s886
      %s888 = sshll.u32 %s5, 4
      %s889 = int_to_ptr.hbm [resolvable:$true] %s888
      %891 = dma.vmem_to_hbm [thread:$0]  %s887, 128, %s889, [#allocation4]
    $region41: #{tpu_custom_call.1} parent=1 // pred_fallthru
      _
    // Predicated region
    $region42: #{tpu_custom_call.1} parent=1 // pred_check
      _
    $region43: #{tpu_custom_call.1} parent=1 // pred_check_branch
      %893 = sbr.rel (0) target = $region45
    $region44: #{tpu_custom_call.1} parent=1 // pred_region
      %895 = dma.done [#allocation4], 128
    $region45: #{tpu_custom_call.1} parent=1 // pred_fallthru
      _
    %896 = vsyncpa [#allocation3], 1
    %897 = vsyncpa [#allocation6], 1
    %898 = vsyncpa [#allocation9], 1
    %899 = vsyncpa [#allocation4], 1

</llo_original>
